<compile_context>
chip_gen: v7x
topology: tpu7x:2x2x1
jax: 0.10.0
libtpu: 0.0.40
codegen_flags: <defaults>
</compile_context>

<pallas_src>
import math
import numpy as np
import jax
import jax.numpy as jnp
from jax.experimental import pallas as pl
from jax.experimental.pallas import tpu as pltpu


# ---------------------------------------------------------------------------
# Fused Pallas kernel: resize (one matmul) + 1x1 conv + folded BN + ReLU
# ---------------------------------------------------------------------------

def _fused_resize_embed_kernel(x_ref, rt_ref, w_ref, scale_ref, shift_ref,
                               xr_ref, y_ref):
    # x_ref:     (1, C_in, HW_in)    one batch; channels on sublanes, spatial on lanes
    # rt_ref:    (HW_in, HW_out)     R^T with R = kron(A_h, A_w)
    # w_ref:     (C_out, C_in)       1x1 conv weight
    # scale_ref: (C_out, 1)          folded BN scale  (gamma / sqrt(var + eps))
    # shift_ref: (C_out, 1)          folded BN shift  (conv bias folded in)
    # xr_ref:    (1, C_in, HW_out)   resized feature (carried to the next stage)
    # y_ref:     (1, C_out, HW_out)  conv + BN + ReLU output
    c_in = x_ref.shape[1]

    # --- resize: one lane-dense MXU matmul; spatial stays on the lane axis ---
    xr = jnp.dot(x_ref[0], rt_ref[...], preferred_element_type=jnp.float32)
    xr_ref[0] = xr

    # --- 1x1 conv (+ folded BN) + ReLU, NCHW layout preserved ---
    if c_in <= 16:
        # Tiny C_in: VPU broadcast-multiply-accumulate over input channels;
        # a K=c_in matmul would waste the MXU.  Loop is unrolled at trace time.
        w = w_ref[...]
        y = w[:, 0:1] * xr[0:1, :]
        for c in range(1, c_in):
            y = y + w[:, c:c + 1] * xr[c:c + 1, :]
    else:
        y = jnp.dot(w_ref[...], xr, preferred_element_type=jnp.float32)
    y = y * scale_ref[...] + shift_ref[...]
    y_ref[0] = jnp.maximum(y, 0.0)


def fused_resize_embed(x_flat, r_t, weight, scale, shift):
    """One TransFeat stage.

    x_flat: (B, C_in, HW_in)  f32, NCHW with spatial flattened onto lanes.
    r_t:    (HW_in, HW_out)   f32, transposed kron(A_h, A_w) resize operator.
    weight: (C_out, C_in)     1x1 conv weight.
    scale, shift: (C_out,)    folded BN scale / shift (conv bias already folded).

    Returns (x_resized (B, C_in, HW_out), y (B, C_out, HW_out)).
    """
    B, C_in, HW_in = x_flat.shape
    HW_out = r_t.shape[1]
    C_out = weight.shape[0]
    return pl.pallas_call(
        _fused_resize_embed_kernel,
        out_shape=(jax.ShapeDtypeStruct((B, C_in, HW_out), jnp.float32),
                   jax.ShapeDtypeStruct((B, C_out, HW_out), jnp.float32)),
        grid=(B,),
        in_specs=[
            pl.BlockSpec((1, C_in, HW_in), lambda b: (b, 0, 0)),
            pl.BlockSpec((HW_in, HW_out), lambda b: (0, 0)),
            pl.BlockSpec((C_out, C_in), lambda b: (0, 0)),
            pl.BlockSpec((C_out, 1), lambda b: (0, 0)),
            pl.BlockSpec((C_out, 1), lambda b: (0, 0)),
        ],
        out_specs=(
            pl.BlockSpec((1, C_in, HW_out), lambda b: (b, 0, 0)),
            pl.BlockSpec((1, C_out, HW_out), lambda b: (b, 0, 0)),
        ),
        compiler_params=pltpu.CompilerParams(
            dimension_semantics=("parallel",)),  # independent batches -> v7x 2 TCs
    )(x_flat, r_t, weight, scale.reshape(C_out, 1), shift.reshape(C_out, 1))


# ---------------------------------------------------------------------------
# Host-side setup (resize matrices, parameters) — plain numpy / JAX glue
# ---------------------------------------------------------------------------

def adaptive_avg_pool_matrix(in_size, out_size):
    """Row-stochastic matrix matching F.adaptive_avg_pool2d along one axis."""
    m = np.zeros((out_size, in_size), dtype=np.float32)
    for i in range(out_size):
        start = (i * in_size) // out_size
        end = -((-(i + 1) * in_size) // out_size)  # ceil((i+1)*in/out)
        m[i, start:end] = 1.0 / (end - start)
    return m


def bilinear_matrix(in_size, out_size):
    """Matrix matching F.interpolate(mode='bilinear', align_corners=False) along one axis."""
    m = np.zeros((out_size, in_size), dtype=np.float32)
    scale = in_size / out_size
    for i in range(out_size):
        src = (i + 0.5) * scale - 0.5
        if src < 0.0:
            src = 0.0
        i0 = min(int(math.floor(src)), in_size - 1)
        i1 = min(i0 + 1, in_size - 1)
        l1 = src - i0
        m[i, i0] += 1.0 - l1
        m[i, i1] += l1
    return m


def _resize_mats(cur_H, cur_W, t_H, use_pool):
    # The PyTorch module always resizes to a square (t_H, t_H) target.
    if use_pool:
        return adaptive_avg_pool_matrix(cur_H, t_H), adaptive_avg_pool_matrix(cur_W, t_H)
    return bilinear_matrix(cur_H, t_H), bilinear_matrix(cur_W, t_H)


def make_embed_params(key, c_in, c_out):
    """Deterministic synthetic params for Embed(c_in, c_out) = Conv1x1 + BN + ReLU."""
    k1, k2, k3, k4, k5, k6 = jax.random.split(key, 6)
    weight = jax.random.normal(k1, (c_out, c_in), jnp.float32) / math.sqrt(c_in)
    bias = 0.1 * jax.random.normal(k2, (c_out,), jnp.float32)
    gamma = 1.0 + 0.1 * jax.random.normal(k3, (c_out,), jnp.float32)
    beta = 0.1 * jax.random.normal(k4, (c_out,), jnp.float32)
    running_mean = 0.1 * jax.random.normal(k5, (c_out,), jnp.float32)
    running_var = jax.random.uniform(k6, (c_out,), jnp.float32, 0.5, 1.5)
    eps = 1e-5
    scale = gamma / jnp.sqrt(running_var + eps)
    shift = beta - running_mean * scale
    return dict(weight=weight, bias=bias, scale=scale, shift=shift)


def transfeat_forward(feat_s, params_list, feat_t_list_size):
    """Pallas implementation of TransFeat.forward (list of embedded features)."""
    B, C_s, s_H, s_W = feat_s.shape
    x_flat = feat_s.reshape(B, C_s, s_H * s_W)     # free reshape: spatial onto lanes
    cur_H, cur_W = s_H, s_W
    outs = []
    for i, t_size in enumerate(feat_t_list_size):
        t_H = t_size[2]
        a_h, a_w = _resize_mats(cur_H, cur_W, t_H, s_H >= t_H)
        r_t = jnp.asarray(np.kron(a_h, a_w).T)     # (cur_H*cur_W, t_H*t_H)
        p = params_list[i]
        shift_f = p["shift"] + p["bias"] * p["scale"]   # fold conv bias into BN shift
        x_flat, y_flat = fused_resize_embed(x_flat, r_t, p["weight"],
                                            p["scale"], shift_f)
        c_out = p["weight"].shape[0]
        outs.append(y_flat.reshape(B, c_out, t_H, t_H))  # free reshape back to NCHW
        cur_H, cur_W = t_H, t_H                          # feat_s reassigned, as in PyTorch
    return outs


def reference_forward(feat_s, params_list, feat_t_list_size):
    """Pure-JAX (XLA) reference for correctness checking."""
    s_H = feat_s.shape[2]
    x = feat_s
    outs = []
    for i, t_size in enumerate(feat_t_list_size):
        t_H = t_size[2]
        _, _, H, W = x.shape
        a_h, a_w = _resize_mats(H, W, t_H, s_H >= t_H)
        x = jnp.einsum("ph,bchw,qw->bcpq", a_h, x, a_w)
        p = params_list[i]
        y = jnp.einsum("oc,bchw->bohw", p["weight"], x) + p["bias"][None, :, None, None]
        y = y * p["scale"][None, :, None, None] + p["shift"][None, :, None, None]
        outs.append(jnp.maximum(y, 0.0))
    return outs


if __name__ == "__main__":
    key = jax.random.PRNGKey(0)
    B, C_s, H, W = 2, 4, 16, 16
    feat_s_size = (B, C_s, H, W)
    # Target 0: t_H=8  -> s_H (16) >= 8  -> adaptive_avg_pool branch
    # Target 1: t_H=24 -> s_H (16) <  24 -> bilinear interpolate branch
    feat_t_list_size = [(B, 8, 8, 8), (B, 6, 24, 24)]

    kx, kp = jax.random.split(key)
    feat_s = jax.random.normal(kx, feat_s_size, jnp.float32)
    pkeys = jax.random.split(kp, len(feat_t_list_size))
    params_list = [
        make_embed_params(pkeys[i], C_s, feat_t_list_size[i][1])
        for i in range(len(feat_t_list_size))
    ]

    outs = transfeat_forward(feat_s, params_list, feat_t_list_size)
    outs = jax.block_until_ready(outs)

    refs = reference_forward(feat_s, params_list, feat_t_list_size)
    for o, r, t in zip(outs, refs, feat_t_list_size):
        assert o.shape == tuple(t), (o.shape, t)
        assert jnp.allclose(o, r, atol=1e-4, rtol=1e-4), float(jnp.max(jnp.abs(o - r)))

    print("KERNEL_OK")
</pallas_src>

<mosaic_0001>
module attributes {stable_mosaic.version = 11 : i64} {
  func.func @_fused_resize_embed_kernel(%arg0: i32, %arg1: memref<1x4x256xf32, #tpu.memory_space<vmem>>, %arg2: memref<256x64xf32, #tpu.memory_space<vmem>>, %arg3: memref<8x4xf32, #tpu.memory_space<vmem>>, %arg4: memref<8x1xf32, #tpu.memory_space<vmem>>, %arg5: memref<8x1xf32, #tpu.memory_space<vmem>>, %arg6: memref<1x4x64xf32, #tpu.memory_space<vmem>>, %arg7: memref<1x8x64xf32, #tpu.memory_space<vmem>>) attributes {dimension_semantics = [#tpu.dimension_semantics<parallel>], iteration_bounds = array<i64: 2>, scalar_prefetch = 0 : i64, scratch_operands = 0 : i64, tpu.core_type = #tpu.core_type<tc>, window_params = [{transform_indices = @transform_0, window_bounds = array<i64: 1, 4, 256>}, {pipeline_mode = #tpu.pipeline_mode<synchronous>, transform_indices = @transform_1, window_bounds = array<i64: 256, 64>}, {pipeline_mode = #tpu.pipeline_mode<synchronous>, transform_indices = @transform_2, window_bounds = array<i64: 8, 4>}, {pipeline_mode = #tpu.pipeline_mode<synchronous>, transform_indices = @transform_3, window_bounds = array<i64: 8, 1>}, {pipeline_mode = #tpu.pipeline_mode<synchronous>, transform_indices = @transform_4, window_bounds = array<i64: 8, 1>}, {transform_indices = @transform_5, window_bounds = array<i64: 1, 4, 64>}, {transform_indices = @transform_6, window_bounds = array<i64: 1, 8, 64>}]} {
    %c0 = arith.constant 0 : index
    %c0_0 = arith.constant 0 : index
    %c0_1 = arith.constant 0 : index
    %0 = vector.load %arg1[%c0, %c0_0, %c0_1] : memref<1x4x256xf32, #tpu.memory_space<vmem>>, vector<1x4x256xf32>
    %1 = vector.shape_cast %0 : vector<1x4x256xf32> to vector<4x256xf32>
    %c0_2 = arith.constant 0 : index
    %c0_3 = arith.constant 0 : index
    %2 = vector.load %arg2[%c0_2, %c0_3] : memref<256x64xf32, #tpu.memory_space<vmem>>, vector<256x64xf32>
    %cst = arith.constant dense<0.000000e+00> : vector<4x64xf32>
    %3 = tpu.matmul %1, %2, %cst {dimension_numbers = #tpu.dot_dimension_numbers<[1], [0], [0], [1], [0, 0, 1, 1], [], []>} : vector<4x256xf32>, vector<256x64xf32>, vector<4x64xf32> -> vector<4x64xf32>
    %c0_4 = arith.constant 0 : index
    %c0_5 = arith.constant 0 : index
    %c0_6 = arith.constant 0 : index
    %4 = vector.load %arg6[%c0_4, %c0_5, %c0_6] : memref<1x4x64xf32, #tpu.memory_space<vmem>>, vector<1x4x64xf32>
    %5 = vector.shape_cast %4 : vector<1x4x64xf32> to vector<4x64xf32>
    %6 = vector.shape_cast %3 : vector<4x64xf32> to vector<1x4x64xf32>
    tpu.vector_store %arg6[%c0_4, %c0_5, %c0_6], %6 {strides = array<i32>} : memref<1x4x64xf32, #tpu.memory_space<vmem>>, vector<1x4x64xf32>,
    %c0_7 = arith.constant 0 : index
    %c0_8 = arith.constant 0 : index
    %7 = vector.load %arg3[%c0_7, %c0_8] : memref<8x4xf32, #tpu.memory_space<vmem>>, vector<8x4xf32>
    %8 = vector.extract_strided_slice %7 {offsets = [0, 0], sizes = [8, 1], strides = [1, 1]} : vector<8x4xf32> to vector<8x1xf32>
    %9 = vector.extract_strided_slice %3 {offsets = [0, 0], sizes = [1, 64], strides = [1, 1]} : vector<4x64xf32> to vector<1x64xf32>
    %10 = vector.broadcast %8 : vector<8x1xf32> to vector<8x64xf32>
    %11 = vector.broadcast %9 : vector<1x64xf32> to vector<8x64xf32>
    %12 = arith.mulf %10, %11 : vector<8x64xf32>
    %13 = vector.extract_strided_slice %7 {offsets = [0, 1], sizes = [8, 1], strides = [1, 1]} : vector<8x4xf32> to vector<8x1xf32>
    %14 = vector.extract_strided_slice %3 {offsets = [1, 0], sizes = [1, 64], strides = [1, 1]} : vector<4x64xf32> to vector<1x64xf32>
    %15 = vector.broadcast %13 : vector<8x1xf32> to vector<8x64xf32>
    %16 = vector.broadcast %14 : vector<1x64xf32> to vector<8x64xf32>
    %17 = arith.mulf %15, %16 : vector<8x64xf32>
    %18 = arith.addf %12, %17 : vector<8x64xf32>
    %19 = vector.extract_strided_slice %7 {offsets = [0, 2], sizes = [8, 1], strides = [1, 1]} : vector<8x4xf32> to vector<8x1xf32>
    %20 = vector.extract_strided_slice %3 {offsets = [2, 0], sizes = [1, 64], strides = [1, 1]} : vector<4x64xf32> to vector<1x64xf32>
    %21 = vector.broadcast %19 : vector<8x1xf32> to vector<8x64xf32>
    %22 = vector.broadcast %20 : vector<1x64xf32> to vector<8x64xf32>
    %23 = arith.mulf %21, %22 : vector<8x64xf32>
    %24 = arith.addf %18, %23 : vector<8x64xf32>
    %25 = vector.extract_strided_slice %7 {offsets = [0, 3], sizes = [8, 1], strides = [1, 1]} : vector<8x4xf32> to vector<8x1xf32>
    %26 = vector.extract_strided_slice %3 {offsets = [3, 0], sizes = [1, 64], strides = [1, 1]} : vector<4x64xf32> to vector<1x64xf32>
    %27 = vector.broadcast %25 : vector<8x1xf32> to vector<8x64xf32>
    %28 = vector.broadcast %26 : vector<1x64xf32> to vector<8x64xf32>
    %29 = arith.mulf %27, %28 : vector<8x64xf32>
    %30 = arith.addf %24, %29 : vector<8x64xf32>
    %c0_9 = arith.constant 0 : index
    %c0_10 = arith.constant 0 : index
    %31 = vector.load %arg4[%c0_9, %c0_10] : memref<8x1xf32, #tpu.memory_space<vmem>>, vector<8x1xf32>
    %32 = vector.broadcast %31 : vector<8x1xf32> to vector<8x64xf32>
    %33 = arith.mulf %30, %32 : vector<8x64xf32>
    %c0_11 = arith.constant 0 : index
    %c0_12 = arith.constant 0 : index
    %34 = vector.load %arg5[%c0_11, %c0_12] : memref<8x1xf32, #tpu.memory_space<vmem>>, vector<8x1xf32>
    %35 = vector.broadcast %34 : vector<8x1xf32> to vector<8x64xf32>
    %36 = arith.addf %33, %35 : vector<8x64xf32>
    %cst_13 = arith.constant 0.000000e+00 : f32
    %37 = vector.broadcast %cst_13 : f32 to vector<8x64xf32>
    %38 = arith.maximumf %36, %37 : vector<8x64xf32>
    %c0_14 = arith.constant 0 : index
    %c0_15 = arith.constant 0 : index
    %c0_16 = arith.constant 0 : index
    %39 = vector.load %arg7[%c0_14, %c0_15, %c0_16] : memref<1x8x64xf32, #tpu.memory_space<vmem>>, vector<1x8x64xf32>
    %40 = vector.shape_cast %39 : vector<1x8x64xf32> to vector<8x64xf32>
    %41 = vector.shape_cast %38 : vector<8x64xf32> to vector<1x8x64xf32>
    tpu.vector_store %arg7[%c0_14, %c0_15, %c0_16], %41 {strides = array<i32>} : memref<1x8x64xf32, #tpu.memory_space<vmem>>, vector<1x8x64xf32>,
    return
  }
  func.func @transform_0(%arg0: i32) -> (i32, i32, i32) {
    %c0_i32 = arith.constant 0 : i32
    %c0_i32_0 = arith.constant 0 : i32
    %c0_i32_1 = arith.constant 0 : i32
    return %arg0, %c0_i32, %c0_i32_0 : i32, i32, i32
  }
  func.func @transform_1(%arg0: i32) -> (i32, i32) {
    %c0_i32 = arith.constant 0 : i32
    %c0_i32_0 = arith.constant 0 : i32
    %c0_i32_1 = arith.constant 0 : i32
    return %c0_i32, %c0_i32_0 : i32, i32
  }
  func.func @transform_2(%arg0: i32) -> (i32, i32) {
    %c0_i32 = arith.constant 0 : i32
    %c0_i32_0 = arith.constant 0 : i32
    %c0_i32_1 = arith.constant 0 : i32
    return %c0_i32, %c0_i32_0 : i32, i32
  }
  func.func @transform_3(%arg0: i32) -> (i32, i32) {
    %c0_i32 = arith.constant 0 : i32
    %c0_i32_0 = arith.constant 0 : i32
    %c0_i32_1 = arith.constant 0 : i32
    return %c0_i32, %c0_i32_0 : i32, i32
  }
  func.func @transform_4(%arg0: i32) -> (i32, i32) {
    %c0_i32 = arith.constant 0 : i32
    %c0_i32_0 = arith.constant 0 : i32
    %c0_i32_1 = arith.constant 0 : i32
    return %c0_i32, %c0_i32_0 : i32, i32
  }
  func.func @transform_5(%arg0: i32) -> (i32, i32, i32) {
    %c0_i32 = arith.constant 0 : i32
    %c0_i32_0 = arith.constant 0 : i32
    %c0_i32_1 = arith.constant 0 : i32
    return %arg0, %c0_i32, %c0_i32_0 : i32, i32, i32
  }
  func.func @transform_6(%arg0: i32) -> (i32, i32, i32) {
    %c0_i32 = arith.constant 0 : i32
    %c0_i32_0 = arith.constant 0 : i32
    %c0_i32_1 = arith.constant 0 : i32
    return %arg0, %c0_i32, %c0_i32_0 : i32, i32, i32
  }
}

</mosaic_0001>

<llo_original>
// kernel: tpu_custom_call.1
$region0: #{tpu_custom_call.1}
  #allocation0 [shape = 'u32[]', space=smem, size = 0x4, offset = 0x4, fixed_abs, tag = 'smem constant byte address 0x4 - core index']
  #allocation1 [shape = 'u32[144,128]{1,0:T(1,128)}', space=vmem, size = 0x12000, scoped, tag = 'internal scratch']
  %s0 = inlined_call_operand.vmem [shape: f32[2,4,256], index: 0, kind: input, shape index: {}]
  %s1 = inlined_call_operand.vmem [shape: f32[256,64], index: 1, kind: input, shape index: {}]
  %s2 = inlined_call_operand.vmem [shape: f32[8,4], index: 2, kind: input, shape index: {}]
  %s3 = inlined_call_operand.vmem [shape: f32[8,1], index: 3, kind: input, shape index: {}]
  %s4 = inlined_call_operand.vmem [shape: f32[8,1], index: 4, kind: input, shape index: {}]
  %s5 = inlined_call_operand.hbm [shape: f32[2,4,64], index: 5, kind: output, shape index: {0}]
  %s6 = inlined_call_operand.hbm [shape: f32[2,8,64], index: 6, kind: output, shape index: {1}]
  %7 = xla_tuple %s5, %s6
  %s8 = sld [smem:[#allocation0]]
  $region61: #{tpu_custom_call.1} parent=0
    _
  %s10 = ssub.s32 1, %s8
  %s11 = scalar_select 0, %s10, %s8
  $region1: #{tpu_custom_call.1} parent=0
    #allocation2 [shape = 'u8[4096]{0}', space=vmem, size = 0x1000, scoped, tag = 'output window, operand 0']
    #allocation3 [shape = 's32[2]{0}', space=sflag, size = 0x8, scoped, tag = 'scoped memory for tpu_custom_call.1']
    #allocation4 [shape = 'u8[8192]{0}', space=vmem, size = 0x2000, scoped, tag = 'output window, operand 1']
    #allocation5 [shape = 's32[2]{0}', space=sflag, size = 0x8, scoped, tag = 'scoped memory for tpu_custom_call.1']
    %12 = vsyncpa [#allocation3], 0
    %s13 = scalar_lea.sflag [#allocation3], 1
    %14 = vsyncpa %s13, 0
    %15 = vsyncpa [#allocation5], 0
    %s16 = scalar_lea.sflag [#allocation5], 1
    %17 = vsyncpa %s16, 0
    loop: start=0, step=1, limit=4
    $region2: #{tpu_custom_call.1} parent=1 // loop_pre_header
      _
    $region3: #{tpu_custom_call.1} parent=1 // loop_header
      %s19 = sphi 0, %s23
      %p20 = scmp.ge.s32.totalorder %s19, 4
      %s29 = sphi 0, %s31
      %s32 = sphi 0, %s29
      %s33 = sphi 0, %s32
      %s49 = sphi 0, %s33
      %s53 = sphi 0, %s53
      %s55 = sphi 0, %s53
      %s56 = sphi 0, %s55
      %s70 = sphi 0, %s56
      %s74 = sphi 0, %s74
      %s76 = sphi 0, %s74
      %s77 = sphi 0, %s76
      %s91 = sphi 0, %s77
      %s95 = sphi 0, %s95
      %s97 = sphi 0, %s95
      %s98 = sphi 0, %s97
      %s112 = sphi 0, %s98
      %s116 = sphi 0, %s116
      %s118 = sphi 0, %s116
      %s119 = sphi 0, %s118
      %s133 = sphi 0, %s119
      %s139 = sphi 0, %s141
      %s142 = sphi 0, %s139
      %s143 = sphi 0, %s142
      %s159 = sphi 0, %s143
      %s165 = sphi 0, %s167
      %s168 = sphi 0, %s165
      %s169 = sphi 0, %s168
      %s185 = sphi 0, %s169
    $region4: #{tpu_custom_call.1} parent=1 // loop_header_branch
      %22 = sbr.rel (%p20) target = $region8
    $region5: #{tpu_custom_call.1} parent=1 // loop_body
      %s24 = ssub.s32 %s19, 1
      %s25 = ssub.s32 %s19, 2
      %s26 = sadd.s32 %s19, 1
      %s27 = ssub.s32 %s19, %s26
      %p28 = scmp.eq.s32.totalorder %s27, 0
      %s30 = sadd.s32 %s29, 1
      %s31 = scalar_select %p28, %s29, %s30
      %p34 = pneg %p28
      %p35 = scmp.eq.s32.totalorder %s19, 1
      %p36 = por %p34, %p35
      %p37 = scmp.ne.s32.totalorder %s29, %s32
      %p38 = scmp.eq.s32.totalorder %s19, 0
      %p39 = por %p37, %p38
      %p40 = scmp.ne.s32.totalorder %s29, %s32
      %p41 = scmp.eq.s32.totalorder %s24, 1
      %p42 = por %p40, %p41
      %p43 = scmp.ne.s32.totalorder %s32, %s33
      %p44 = scmp.eq.s32.totalorder %s24, 0
      %p45 = por %p43, %p44
      %p46 = scmp.ne.s32.totalorder %s32, %s33
      %p47 = scmp.eq.s32.totalorder %s25, 1
      %p48 = por %p46, %p47
      %p50 = scmp.ne.s32.totalorder %s33, %s49
      %p51 = scmp.eq.s32.totalorder %s25, 0
      %p52 = por %p50, %p51
      %s54 = sadd.s32 %s53, 1
      %p57 = scmp.eq.s32.totalorder %s19, 1
      %p58 = scmp.ne.s32.totalorder %s53, %s55
      %p59 = scmp.eq.s32.totalorder %s19, 0
      %p60 = por %p58, %p59
      %p61 = scmp.ne.s32.totalorder %s53, %s55
      %p62 = scmp.eq.s32.totalorder %s24, 1
      %p63 = por %p61, %p62
      %p64 = scmp.ne.s32.totalorder %s55, %s56
      %p65 = scmp.eq.s32.totalorder %s24, 0
      %p66 = por %p64, %p65
      %p67 = scmp.ne.s32.totalorder %s55, %s56
      %p68 = scmp.eq.s32.totalorder %s25, 1
      %p69 = por %p67, %p68
      %p71 = scmp.ne.s32.totalorder %s56, %s70
      %p72 = scmp.eq.s32.totalorder %s25, 0
      %p73 = por %p71, %p72
      %s75 = sadd.s32 %s74, 1
      %p78 = scmp.eq.s32.totalorder %s19, 1
      %p79 = scmp.ne.s32.totalorder %s74, %s76
      %p80 = scmp.eq.s32.totalorder %s19, 0
      %p81 = por %p79, %p80
      %p82 = scmp.ne.s32.totalorder %s74, %s76
      %p83 = scmp.eq.s32.totalorder %s24, 1
      %p84 = por %p82, %p83
      %p85 = scmp.ne.s32.totalorder %s76, %s77
      %p86 = scmp.eq.s32.totalorder %s24, 0
      %p87 = por %p85, %p86
      %p88 = scmp.ne.s32.totalorder %s76, %s77
      %p89 = scmp.eq.s32.totalorder %s25, 1
      %p90 = por %p88, %p89
      %p92 = scmp.ne.s32.totalorder %s77, %s91
      %p93 = scmp.eq.s32.totalorder %s25, 0
      %p94 = por %p92, %p93
      %s96 = sadd.s32 %s95, 1
      %p99 = scmp.eq.s32.totalorder %s19, 1
      %p100 = scmp.ne.s32.totalorder %s95, %s97
      %p101 = scmp.eq.s32.totalorder %s19, 0
      %p102 = por %p100, %p101
      %p103 = scmp.ne.s32.totalorder %s95, %s97
      %p104 = scmp.eq.s32.totalorder %s24, 1
      %p105 = por %p103, %p104
      %p106 = scmp.ne.s32.totalorder %s97, %s98
      %p107 = scmp.eq.s32.totalorder %s24, 0
      %p108 = por %p106, %p107
      %p109 = scmp.ne.s32.totalorder %s97, %s98
      %p110 = scmp.eq.s32.totalorder %s25, 1
      %p111 = por %p109, %p110
      %p113 = scmp.ne.s32.totalorder %s98, %s112
      %p114 = scmp.eq.s32.totalorder %s25, 0
      %p115 = por %p113, %p114
      %s117 = sadd.s32 %s116, 1
      %p120 = scmp.eq.s32.totalorder %s19, 1
      %p121 = scmp.ne.s32.totalorder %s116, %s118
      %p122 = scmp.eq.s32.totalorder %s19, 0
      %p123 = por %p121, %p122
      %p124 = scmp.ne.s32.totalorder %s116, %s118
      %p125 = scmp.eq.s32.totalorder %s24, 1
      %p126 = por %p124, %p125
      %p127 = scmp.ne.s32.totalorder %s118, %s119
      %p128 = scmp.eq.s32.totalorder %s24, 0
      %p129 = por %p127, %p128
      %p130 = scmp.ne.s32.totalorder %s118, %s119
      %p131 = scmp.eq.s32.totalorder %s25, 1
      %p132 = por %p130, %p131
      %p134 = scmp.ne.s32.totalorder %s119, %s133
      %p135 = scmp.eq.s32.totalorder %s25, 0
      %p136 = por %p134, %p135
      %s137 = ssub.s32 %s19, %s26
      %p138 = scmp.eq.s32.totalorder %s137, 0
      %s140 = sadd.s32 %s139, 1
      %s141 = scalar_select %p138, %s139, %s140
      %p144 = pneg %p138
      %p145 = scmp.eq.s32.totalorder %s19, 1
      %p146 = por %p144, %p145
      %p147 = scmp.ne.s32.totalorder %s139, %s142
      %p148 = scmp.eq.s32.totalorder %s19, 0
      %p149 = por %p147, %p148
      %p150 = scmp.ne.s32.totalorder %s139, %s142
      %p151 = scmp.eq.s32.totalorder %s24, 1
      %p152 = por %p150, %p151
      %p153 = scmp.ne.s32.totalorder %s142, %s143
      %p154 = scmp.eq.s32.totalorder %s24, 0
      %p155 = por %p153, %p154
      %p156 = scmp.ne.s32.totalorder %s142, %s143
      %p157 = scmp.eq.s32.totalorder %s25, 1
      %p158 = por %p156, %p157
      %p160 = scmp.ne.s32.totalorder %s143, %s159
      %p161 = scmp.eq.s32.totalorder %s25, 0
      %p162 = por %p160, %p161
      %s163 = ssub.s32 %s19, %s26
      %p164 = scmp.eq.s32.totalorder %s163, 0
      %s166 = sadd.s32 %s165, 1
      %s167 = scalar_select %p164, %s165, %s166
      %p170 = pneg %p164
      %p171 = scmp.eq.s32.totalorder %s19, 1
      %p172 = por %p170, %p171
      %p173 = scmp.ne.s32.totalorder %s165, %s168
      %p174 = scmp.eq.s32.totalorder %s19, 0
      %p175 = por %p173, %p174
      %p176 = scmp.ne.s32.totalorder %s165, %s168
      %p177 = scmp.eq.s32.totalorder %s24, 1
      %p178 = por %p176, %p177
      %p179 = scmp.ne.s32.totalorder %s168, %s169
      %p180 = scmp.eq.s32.totalorder %s24, 0
      %p181 = por %p179, %p180
      %p182 = scmp.ne.s32.totalorder %s168, %s169
      %p183 = scmp.eq.s32.totalorder %s25, 1
      %p184 = por %p182, %p183
      %p186 = scmp.ne.s32.totalorder %s169, %s185
      %p187 = scmp.eq.s32.totalorder %s25, 0
      %p188 = por %p186, %p187
      %p189 = scmp.le.s32.totalorder 1, %s19
      %p190 = scmp.lt.s32.totalorder %s19, 3
      %p191 = pnand %p189, %p190
      %p192 = pneg %p191
      // Predicated region
      $region9: #{tpu_custom_call.1} parent=5 // pred_check
        _
      $region10: #{tpu_custom_call.1} parent=5 // pred_check_branch
        %194 = sbr.rel (%p191) target = $region12
      $region11: #{tpu_custom_call.1} parent=5 // pred_region
        %s195 = ssub.s32 %s19, 1
        // Predicated region
        $region13: #{tpu_custom_call.1} parent=11 // pred_check
          %p196 = pneg %p66
        $region14: #{tpu_custom_call.1} parent=11 // pred_check_branch
          %198 = sbr.rel (%p196) target = $region16
        $region15: #{tpu_custom_call.1} parent=11 // pred_region
          _
        $region16: #{tpu_custom_call.1} parent=11 // pred_fallthru
          _
        // Predicated region
        $region17: #{tpu_custom_call.1} parent=11 // pred_check
          %p199 = pneg %p87
        $region18: #{tpu_custom_call.1} parent=11 // pred_check_branch
          %201 = sbr.rel (%p199) target = $region20
        $region19: #{tpu_custom_call.1} parent=11 // pred_region
          _
        $region20: #{tpu_custom_call.1} parent=11 // pred_fallthru
          _
        // Predicated region
        $region21: #{tpu_custom_call.1} parent=11 // pred_check
          %p202 = pneg %p108
        $region22: #{tpu_custom_call.1} parent=11 // pred_check_branch
          %204 = sbr.rel (%p202) target = $region24
        $region23: #{tpu_custom_call.1} parent=11 // pred_region
          _
        $region24: #{tpu_custom_call.1} parent=11 // pred_fallthru
          _
        // Predicated region
        $region25: #{tpu_custom_call.1} parent=11 // pred_check
          %p205 = pneg %p129
        $region26: #{tpu_custom_call.1} parent=11 // pred_check_branch
          %207 = sbr.rel (%p205) target = $region28
        $region27: #{tpu_custom_call.1} parent=11 // pred_region
          _
        $region28: #{tpu_custom_call.1} parent=11 // pred_fallthru
          _
      $region12: #{tpu_custom_call.1} parent=5 // pred_fallthru
        _
      %p208 = scmp.lt.s32.totalorder %s19, 2
      // Predicated region
      $region29: #{tpu_custom_call.1} parent=5 // pred_check
        %p209 = pneg %p208
      $region30: #{tpu_custom_call.1} parent=5 // pred_check_branch
        %211 = sbr.rel (%p209) target = $region32
      $region31: #{tpu_custom_call.1} parent=5 // pred_region
        // Predicated region
        $region33: #{tpu_custom_call.1} parent=31 // pred_check
          %p212 = pneg %p39
        $region34: #{tpu_custom_call.1} parent=31 // pred_check_branch
          %214 = sbr.rel (%p212) target = $region36
        $region35: #{tpu_custom_call.1} parent=31 // pred_region
          %p215 = scmp.lt.s32.totalorder %s19, 1
          %s216 = scalar_select %p215, %s19, 1
          %s217 = smul.addr %s216, 2
          %s218 = smul.addr %s217, 4
          %s219 = scalar_lea.vmem %s0, %s218
        $region36: #{tpu_custom_call.1} parent=31 // pred_fallthru
          _
      $region32: #{tpu_custom_call.1} parent=5 // pred_fallthru
        _
      %p220 = scmp.le.s32.totalorder 1, %s19
      %p221 = scmp.lt.s32.totalorder %s19, 3
      %p222 = pnand %p220, %p221
      %p223 = pneg %p222
      // Predicated region
      $region37: #{tpu_custom_call.1} parent=5 // pred_check
        _
      $region38: #{tpu_custom_call.1} parent=5 // pred_check_branch
        %225 = sbr.rel (%p222) target = $region40
      $region39: #{tpu_custom_call.1} parent=5 // pred_region
        %s226 = ssub.s32 %s19, 1
        %p227 = scmp.lt.s32.totalorder %s24, 1
        %s228 = scalar_select %p227, %s24, 1
        %s229 = smul.addr %s228, 2
        %s230 = smul.addr %s229, 4
        %s231 = scalar_lea.vmem %s0, %s230
        %p232 = pneg %p45
        %p233 = pneg %p42
        %p234 = pneg %p66
        %p235 = pneg %p63
        %p236 = pneg %p87
        %p237 = pneg %p84
        %p238 = pneg %p108
        %p239 = pneg %p105
        %p240 = pneg %p129
        %p241 = pneg %p126
        %p242 = pneg %p155
        %p243 = pneg %p152
        %s244 = sand.u32 %s142, 1
        %s245 = scalar_lea.sflag [#allocation3], %s244
        %s246 = sand.u32 %s142, 1
        %s247 = smul.addr %s246, 4
        %s248 = scalar_lea.vmem [#allocation2], %s247
        %p249 = pneg %p181
        %p250 = pneg %p178
        %s251 = sand.u32 %s168, 1
        %s252 = scalar_lea.sflag [#allocation5], %s251
        %s253 = sand.u32 %s168, 1
        %s254 = smul.addr %s253, 8
        %s255 = scalar_lea.vmem [#allocation4], %s254
        %p256 = scmp.lt.s32.totalorder %s24, 1
        %s257 = scalar_select %p256, %s24, 1
        %s258 = smul.addr %s257, 2
        %s259 = smul.addr %s258, 4
        %s260 = scalar_lea.vmem %s0, %s259
        %v261 = vld [vmem:[%s260] sm:$0xff]
        %v262 = vld [vmem:[%s1] sm:$0xff]
        %v263 = vld [vmem:[%s1 + $0x8] sm:$0xff]
        %v264 = vld [vmem:[%s1 + $0x10] sm:$0xff]
        %v265 = vld [vmem:[%s1 + $0x18] sm:$0xff]
        %v266 = vld [vmem:[%s1 + $0x20] sm:$0xff]
        %v267 = vld [vmem:[%s1 + $0x28] sm:$0xff]
        %v268 = vld [vmem:[%s1 + $0x30] sm:$0xff]
        %v269 = vld [vmem:[%s1 + $0x38] sm:$0xff]
        %v270 = vld [vmem:[%s1 + $0x40] sm:$0xff]
        %v271 = vld [vmem:[%s1 + $0x48] sm:$0xff]
        %v272 = vld [vmem:[%s1 + $0x50] sm:$0xff]
        %v273 = vld [vmem:[%s1 + $0x58] sm:$0xff]
        %v274 = vld [vmem:[%s1 + $0x60] sm:$0xff]
        %v275 = vld [vmem:[%s1 + $0x68] sm:$0xff]
        %v276 = vld [vmem:[%s1 + $0x70] sm:$0xff]
        %v277 = vld [vmem:[%s1 + $0x78] sm:$0xff]
        %v278 = vld [vmem:[%s1 + $0x80] sm:$0xff]
        %v279 = vld [vmem:[%s1 + $0x88] sm:$0xff]
        %v280 = vld [vmem:[%s1 + $0x90] sm:$0xff]
        %v281 = vld [vmem:[%s1 + $0x98] sm:$0xff]
        %v282 = vld [vmem:[%s1 + $0xa0] sm:$0xff]
        %v283 = vld [vmem:[%s1 + $0xa8] sm:$0xff]
        %v284 = vld [vmem:[%s1 + $0xb0] sm:$0xff]
        %v285 = vld [vmem:[%s1 + $0xb8] sm:$0xff]
        %v286 = vld [vmem:[%s1 + $0xc0] sm:$0xff]
        %v287 = vld [vmem:[%s1 + $0xc8] sm:$0xff]
        %v288 = vld [vmem:[%s1 + $0xd0] sm:$0xff]
        %v289 = vld [vmem:[%s1 + $0xd8] sm:$0xff]
        %v290 = vld [vmem:[%s1 + $0xe0] sm:$0xff]
        %v291 = vld [vmem:[%s1 + $0xe8] sm:$0xff]
        %v292 = vld [vmem:[%s1 + $0xf0] sm:$0xff]
        %v293 = vld [vmem:[%s1 + $0xf8] sm:$0xff]
        %v295 = vcombine.high %v261, %v261
        %297 = vmatprep.subr.mxu0 0.0
        %298 = vmatpush1.msra.mxu0 %v262
        %299 = vmatprep.subr.mxu0 0.0
        %300 = vmatpush1.msra.mxu0 %v263
        %301 = vmatprep.subr.mxu0 0.0
        %302 = vmatpush1.msra.mxu0 %v264
        %303 = vmatprep.subr.mxu0 0.0
        %304 = vmatpush1.msra.mxu0 %v265
        %305 = vmatprep.subr.mxu0 0.0
        %306 = vmatpush1.msra.mxu0 %v266
        %307 = vmatprep.subr.mxu0 0.0
        %308 = vmatpush1.msra.mxu0 %v267
        %309 = vmatprep.subr.mxu0 0.0
        %310 = vmatpush1.msra.mxu0 %v268
        %311 = vmatprep.subr.mxu0 0.0
        %312 = vmatpush1.msra.mxu0 %v269
        %313 = vmatprep.subr.mxu0 0.0
        %314 = vmatpush1.msra.mxu0 %v270
        %315 = vmatprep.subr.mxu0 0.0
        %316 = vmatpush1.msra.mxu0 %v271
        %317 = vmatprep.subr.mxu0 0.0
        %318 = vmatpush1.msra.mxu0 %v272
        %319 = vmatprep.subr.mxu0 0.0
        %320 = vmatpush1.msra.mxu0 %v273
        %321 = vmatprep.subr.mxu0 0.0
        %322 = vmatpush1.msra.mxu0 %v274
        %323 = vmatprep.subr.mxu0 0.0
        %324 = vmatpush1.msra.mxu0 %v275
        %325 = vmatprep.subr.mxu0 0.0
        %326 = vmatpush1.msra.mxu0 %v276
        %327 = vmatprep.subr.mxu0 0.0
        %328 = vmatpush1.msra.mxu0 %v277
        %329 = vmatprep.subr.mxu0 0.0
        %330 = vmatpush1.msra.mxu0 %v278
        %331 = vmatprep.subr.mxu0 0.0
        %332 = vmatpush1.msra.mxu0 %v279
        %333 = vmatprep.subr.mxu0 0.0
        %334 = vmatpush1.msra.mxu0 %v280
        %335 = vmatprep.subr.mxu0 0.0
        %336 = vmatpush1.msra.mxu0 %v281
        %337 = vmatprep.subr.mxu0 0.0
        %338 = vmatpush1.msra.mxu0 %v282
        %339 = vmatprep.subr.mxu0 0.0
        %340 = vmatpush1.msra.mxu0 %v283
        %341 = vmatprep.subr.mxu0 0.0
        %342 = vmatpush1.msra.mxu0 %v284
        %343 = vmatprep.subr.mxu0 0.0
        %344 = vmatpush1.msra.mxu0 %v285
        %345 = vmatprep.subr.mxu0 0.0
        %346 = vmatpush1.msra.mxu0 %v286
        %347 = vmatprep.subr.mxu0 0.0
        %348 = vmatpush1.msra.mxu0 %v287
        %349 = vmatprep.subr.mxu0 0.0
        %350 = vmatpush1.msra.mxu0 %v288
        %351 = vmatprep.subr.mxu0 0.0
        %352 = vmatpush1.msra.mxu0 %v289
        %353 = vmatprep.subr.mxu0 0.0
        %354 = vmatpush1.msra.mxu0 %v290
        %355 = vmatprep.subr.mxu0 0.0
        %356 = vmatpush1.msra.mxu0 %v291
        %357 = vmatprep.subr.mxu0 0.0
        %358 = vmatpush1.msra.mxu0 %v292
        %359 = vmatprep.subr.mxu0 0.0
        %360 = vmatpush1.msra.mxu0 %v293
        %361 = vmatprep.mubr.f32.mxu0 %v295
        %362 = vmatmul.mubr.f32.gmra.mrb[0].mxu0 %v261
        %v363 = vpop.f32.mrb[0].mxu0
        %v364 = vadd.f32 0.0, %v363
        %v365 = vpop.f32.mrb[0].mxu0
        %366 = vdwg.mxu0
        %vm367 = vcmask 519168
        %368 = vst.msk [vmem:[%s248] sm:$0xf] %vm367, %v364
        %v369 = vld [vmem:[%s2] sm:$0xff]
        %371 = vset.pattern.permute.xlu0 0
        %372 = vperm.xlu0 %371, %v369
        %v373 = vpop.permute.xlu0 %372
        %v375 = vlaneseq
        %v376 = vshrl.u32 %v375, 7
        %v377 = vsub.s32 0, %v376
        %v378 = vrot.slane %v364, %v377
        %v379 = vmul.f32 %v373, %v378
        %380 = vset.pattern.permute.xlu0 1
        %381 = vperm.xlu0 %380, %v369
        %v382 = vpop.permute.xlu0 %381
        %v384 = vlaneseq
        %v385 = vshrl.u32 %v384, 7
        %v386 = vsub.s32 1, %v385
        %v387 = vrot.slane %v364, %v386
        %v388 = vmul.f32 %v382, %v387
        %v389 = vadd.f32 %v379, %v388
        %390 = vset.pattern.permute.xlu0 2
        %391 = vperm.xlu0 %390, %v369
        %v392 = vpop.permute.xlu0 %391
        %v394 = vlaneseq
        %v395 = vshrl.u32 %v394, 7
        %v396 = vsub.s32 2, %v395
        %v397 = vrot.slane %v364, %v396
        %v398 = vmul.f32 %v392, %v397
        %v399 = vadd.f32 %v389, %v398
        %400 = vset.pattern.permute.xlu0 3
        %401 = vperm.xlu0 %400, %v369
        %v402 = vpop.permute.xlu0 %401
        %v404 = vlaneseq
        %v405 = vshrl.u32 %v404, 7
        %v406 = vsub.s32 3, %v405
        %v407 = vrot.slane %v364, %v406
        %v408 = vmul.f32 %v402, %v407
        %v409 = vadd.f32 %v399, %v408
        %v410 = vld [vmem:[%s3] sm:$0xff]
        %412 = vset.pattern.permute.xlu0 0
        %413 = vperm.xlu0 %412, %v410
        %v414 = vpop.permute.xlu0 %413
        %v416 = vmul.f32 %v409, %v414
        %v417 = vld [vmem:[%s4] sm:$0xff]
        %419 = vset.pattern.permute.xlu0 0
        %420 = vperm.xlu0 %419, %v417
        %v421 = vpop.permute.xlu0 %420
        %v423 = vadd.f32 %v416, %v421
        %v424 = vmax.f32 %v423, 0.0
        %vm425 = vcmask 523264
        %426 = vst.msk [vmem:[%s255] sm:$0xff] %vm425, %v424
        %s427 = sand.u32 %s142, 1
        %s428 = scalar_lea.sflag [#allocation3], %s427
        %s429 = sand.u32 %s142, 1
        %s430 = smul.addr %s429, 4
        %s431 = scalar_lea.vmem [#allocation2], %s430
        %s432 = sand.u32 %s168, 1
        %s433 = scalar_lea.sflag [#allocation5], %s432
        %s434 = sand.u32 %s168, 1
        %s435 = smul.addr %s434, 8
        %s436 = scalar_lea.vmem [#allocation4], %s435
        // Predicated region
        $region41: #{tpu_custom_call.1} parent=39 // pred_check
          %p437 = pneg %p152
        $region42: #{tpu_custom_call.1} parent=39 // pred_check_branch
          %439 = sbr.rel (%p437) target = $region44
        $region43: #{tpu_custom_call.1} parent=39 // pred_region
          %s441 = ssub.s32 64, 64
          %442 = vsyncadd %s428, %s441
          %s443 = smul.addr %s24, 64
          %s444 = scalar_lea.hbm %s5, %s443
          %s446 = sshll.u32 %s431, 4
          %s447 = int_to_ptr.vmem [resolvable:$true] %s446
          %449 = dma.vmem_to_hbm [thread:$0]  %s447, 64, %s444, %s428
        $region44: #{tpu_custom_call.1} parent=39 // pred_fallthru
          _
        // Predicated region
        $region45: #{tpu_custom_call.1} parent=39 // pred_check
          %p450 = pneg %p178
        $region46: #{tpu_custom_call.1} parent=39 // pred_check_branch
          %452 = sbr.rel (%p450) target = $region48
        $region47: #{tpu_custom_call.1} parent=39 // pred_region
          %s454 = ssub.s32 128, 128
          %455 = vsyncadd %s433, %s454
          %s456 = smul.addr %s24, 128
          %s457 = scalar_lea.hbm %s6, %s456
          %s459 = sshll.u32 %s436, 4
          %s460 = int_to_ptr.vmem [resolvable:$true] %s459
          %462 = dma.vmem_to_hbm [thread:$0]  %s460, 128, %s457, %s433
        $region48: #{tpu_custom_call.1} parent=39 // pred_fallthru
          _
      $region40: #{tpu_custom_call.1} parent=5 // pred_fallthru
        _
      %p463 = scmp.le.s32.totalorder 2, %s19
      // Predicated region
      $region49: #{tpu_custom_call.1} parent=5 // pred_check
        %p464 = pneg %p463
      $region50: #{tpu_custom_call.1} parent=5 // pred_check_branch
        %466 = sbr.rel (%p464) target = $region52
      $region51: #{tpu_custom_call.1} parent=5 // pred_region
        %s467 = ssub.s32 %s19, 2
        // Predicated region
        $region53: #{tpu_custom_call.1} parent=51 // pred_check
          %p468 = pneg %p158
        $region54: #{tpu_custom_call.1} parent=51 // pred_check_branch
          %470 = sbr.rel (%p468) target = $region56
        $region55: #{tpu_custom_call.1} parent=51 // pred_region
          %s471 = sand.u32 %s143, 1
          %s472 = scalar_lea.sflag [#allocation3], %s471
          %s473 = sand.u32 %s143, 1
          %s474 = smul.addr %s473, 4
          %s475 = scalar_lea.vmem [#allocation2], %s474
          %476 = dma.done %s472, 64
        $region56: #{tpu_custom_call.1} parent=51 // pred_fallthru
          _
        // Predicated region
        $region57: #{tpu_custom_call.1} parent=51 // pred_check
          %p477 = pneg %p184
        $region58: #{tpu_custom_call.1} parent=51 // pred_check_branch
          %479 = sbr.rel (%p477) target = $region60
        $region59: #{tpu_custom_call.1} parent=51 // pred_region
          %s480 = sand.u32 %s169, 1
          %s481 = scalar_lea.sflag [#allocation5], %s480
          %s482 = sand.u32 %s169, 1
          %s483 = smul.addr %s482, 8
          %s484 = scalar_lea.vmem [#allocation4], %s483
          %485 = dma.done %s481, 128
        $region60: #{tpu_custom_call.1} parent=51 // pred_fallthru
          _
      $region52: #{tpu_custom_call.1} parent=5 // pred_fallthru
        _
    $region6: #{tpu_custom_call.1} parent=1 // loop_footer
      %s23 = sadd.s32 1, %s19
    $region7: #{tpu_custom_call.1} parent=1 // loop_footer_branch
      %18 = sbr.rel target = $region3
    $region8: #{tpu_custom_call.1} parent=1 // loop_exit
      _
    %486 = vsyncpa [#allocation3], 1
    %s487 = scalar_lea.sflag [#allocation3], 1
    %488 = vsyncpa %s487, 1
    %489 = vsyncpa [#allocation5], 1
    %s490 = scalar_lea.sflag [#allocation5], 1
    %491 = vsyncpa %s490, 1

</llo_original>
